<compile_context>
chip_gen: v5e
topology: v5e:2x2
jax: 0.10.0
libtpu: 0.0.40
codegen_flags: <defaults>
</compile_context>

<pallas_src>
import math

import jax
import jax.numpy as jnp
from jax.experimental import pallas as pl
from jax.experimental.pallas import tpu as pltpu

_CHUNK_ROWS = 32  # one full (32,128) tile for f32 / bf16 / int8 alike


def _dice_reduce_kernel(x_ref, y_ref, out_ref, acc_ref):
    """Streams one (C, R, 128) spatial tile and updates lane-wise partial sums.

    x_ref:   (C, R, 128)  predictions, native float dtype (upcast per chunk)
    y_ref:   (R, 128)     labels, native integer dtype
    out_ref: (3, C)       float32 [intersect, sum_pred, sum_gt] per channel
    acc_ref: (3, C, 128)  float32 lane-wise running sums (VMEM scratch)
    """
    s_idx = pl.program_id(2)

    @pl.when(s_idx == 0)
    def _():
        acc_ref[...] = jnp.zeros_like(acc_ref)

    C, R = x_ref.shape[0], x_ref.shape[1]
    n_chunks = R // _CHUNK_ROWS

    # One-hot mask never hits HBM: a tiny (C, 1, 128) iota is broadcast
    # against the label chunk.
    class_ids = jax.lax.broadcasted_iota(jnp.int32, (C, 1, 128), 0)

    def chunk_body(ci, carry):
        inter, s_pred, s_gt = carry
        r0 = pl.multiple_of(ci * _CHUNK_ROWS, _CHUNK_ROWS)
        xs = x_ref[:, pl.ds(r0, _CHUNK_ROWS), :]                  # (C,32,128)
        ys = y_ref[pl.ds(r0, _CHUNK_ROWS), :].astype(jnp.int32)   # (32,128)
        m = ys[None, :, :] == class_ids                           # (C,32,128)
        xf = xs.astype(jnp.float32)                               # in-vreg cast
        inter = inter + jnp.sum(jnp.where(m, xf, 0.0), axis=1)
        s_pred = s_pred + jnp.sum(xf, axis=1)
        s_gt = s_gt + jnp.sum(jnp.where(m, 1.0, 0.0), axis=1)
        return inter, s_pred, s_gt

    if n_chunks <= 8:
        unroll = True
    elif n_chunks % 8 == 0:
        unroll = 8
    else:
        unroll = False

    zeros = jnp.zeros((C, 128), jnp.float32)
    inter, s_pred, s_gt = jax.lax.fori_loop(
        0, n_chunks, chunk_body, (zeros, zeros, zeros), unroll=unroll)

    # Lane-wise accumulation; the 128-lane reduction is deferred to the end.
    acc_ref[0] += inter
    acc_ref[1] += s_pred
    acc_ref[2] += s_gt

    @pl.when(s_idx == pl.num_programs(2) - 1)
    def _():
        out_ref[...] = jnp.sum(acc_ref[...], axis=-1)             # (3, C)


def _round_up(v, m):
    return -(-v // m) * m


def _tensorcores_per_device():
    """TensorCores one Pallas grid can span via megacore 'parallel' axes."""
    try:
        kind = jax.devices()[0].device_kind.lower()
    except Exception:
        return 1
    if "lite" in kind or "v5e" in kind or "v6e" in kind:
        return 1
    if "v4" in kind or "v5p" in kind or "v7" in kind or "7x" in kind:
        return 2
    return 1


def _pick_block_rows(r_total, num_splits, bytes_per_row,
                     target_bytes=2 << 20, max_rows=1024):
    """Rows (of 128 voxels) per grid step: sized by a ~2 MiB x+y byte budget,
    capped by what one split needs and max_rows; always multiple of 32."""
    align = _CHUNK_ROWS
    need = _round_up(max(1, -(-r_total // num_splits)), align)
    target = max(align, (target_bytes // max(bytes_per_row, 1)) // align * align)
    return max(align, min(target, need, max_rows))


def memory_efficient_soft_dice_loss(x, y, smooth=1.0, block_rows=None,
                                    num_splits=None):
    """Forward pass of MemoryEfficientSoftDiceLoss (apply_nonlin=None,
    batch_dice=False, do_bg=True, loss_mask=None).

    x: (B, C, *spatial) float predictions (streamed in native dtype)
    y: (B, *spatial) or (B, 1, *spatial) integer labels in [0, C)
    """
    B, C = x.shape[0], x.shape[1]
    S = math.prod(x.shape[2:])
    r_total = -(-S // 128)

    # Labels stream in their native narrow dtype (uint8/int8/int16/int32);
    # only exotic dtypes (or ones that cannot hold the padding label C) are
    # widened here.
    int_dtypes = (jnp.int8, jnp.uint8, jnp.int16, jnp.uint16, jnp.int32,
                  jnp.uint32)
    if not any(y.dtype == d for d in int_dtypes):
        y = y.astype(jnp.int32)
    elif jnp.iinfo(y.dtype).max < C:
        y = y.astype(jnp.int32)

    # Megacore chips: guarantee an even number (>= 2) of parallel grid units.
    if num_splits is None:
        if _tensorcores_per_device() >= 2 and B % 2 == 1:
            num_splits = 2
        else:
            num_splits = 1
    num_splits = max(1, int(num_splits))

    bytes_per_row = 128 * (C * x.dtype.itemsize + y.dtype.itemsize)
    if block_rows is None:
        block_rows = _pick_block_rows(r_total, num_splits, bytes_per_row)
    block_rows = _round_up(int(block_rows), _CHUNK_ROWS)

    span = block_rows * num_splits
    padded_r = _round_up(max(r_total, 1), span)
    steps = padded_r // span

    # Exact padding: x=0 adds nothing to intersect/sum_pred, label=C matches
    # no channel so sum_gt is unchanged. Skipped entirely when not needed.
    x_flat = x.reshape(B, C, S)
    y_flat = y.reshape(B, S)
    pad = padded_r * 128 - S
    if pad:
        x_flat = jnp.pad(x_flat, ((0, 0), (0, 0), (0, pad)))
        y_flat = jnp.pad(y_flat, ((0, 0), (0, pad)), constant_values=C)
    x4 = x_flat.reshape(B, C, padded_r, 128)
    y4 = y_flat.reshape(B, 1, padded_r, 128)

    # VMEM budget: double-buffered input streams + accumulator + headroom.
    x_block_bytes = C * block_rows * 128 * x.dtype.itemsize
    y_block_bytes = block_rows * 128 * y.dtype.itemsize
    acc_bytes = 3 * C * 128 * 4
    vmem_limit = 2 * (x_block_bytes + y_block_bytes) + acc_bytes + (4 << 20)
    vmem_limit = int(min(max(vmem_limit, 32 << 20), 48 << 20))

    sums = pl.pallas_call(
        _dice_reduce_kernel,
        out_shape=jax.ShapeDtypeStruct((B, num_splits, 3, C), jnp.float32),
        grid_spec=pltpu.PrefetchScalarGridSpec(
            num_scalar_prefetch=0,
            grid=(B, num_splits, steps),
            in_specs=[
                pl.BlockSpec((None, C, block_rows, 128),
                             lambda b, p, s: (b, 0, p * steps + s, 0)),
                pl.BlockSpec((None, None, block_rows, 128),
                             lambda b, p, s: (b, 0, p * steps + s, 0)),
            ],
            out_specs=pl.BlockSpec((None, None, 3, C),
                                   lambda b, p, s: (b, p, 0, 0)),
            scratch_shapes=[pltpu.VMEM((3, C, 128), jnp.float32)],
        ),
        compiler_params=pltpu.CompilerParams(
            dimension_semantics=("parallel", "parallel", "arbitrary"),
            vmem_limit_bytes=vmem_limit),
    )(x4, y4)

    sums = sums.sum(axis=1)                    # (B, 3, C): combine splits
    intersect, sum_pred, sum_gt = sums[:, 0], sums[:, 1], sums[:, 2]

    # batch_dice=False, do_bg=True path; clip matches torch.clip(v, 1e-8).
    dc = (2.0 * intersect + smooth) / jnp.maximum(sum_gt + sum_pred + smooth,
                                                  1e-8)
    return -jnp.mean(dc)


def _reference_loss(x, y, smooth=1.0):
    B, C = x.shape[0], x.shape[1]
    xf = x.reshape(B, C, -1).astype(jnp.float32)
    yf = y.reshape(B, 1, -1).astype(jnp.int32)
    onehot = (yf == jnp.arange(C, dtype=jnp.int32)[None, :, None]).astype(
        jnp.float32)
    intersect = jnp.sum(xf * onehot, axis=-1)
    sum_pred = jnp.sum(xf, axis=-1)
    sum_gt = jnp.sum(onehot, axis=-1)
    dc = (2.0 * intersect + smooth) / jnp.maximum(sum_gt + sum_pred + smooth,
                                                  1e-8)
    return -jnp.mean(dc)


if __name__ == "__main__":
    key = jax.random.PRNGKey(0)
    kx, ky, kx2, ky2, kx3, ky3 = jax.random.split(key, 6)

    # Small primary test: B=2, C=4, 16x16 spatial, float32 x, int32 labels.
    B, C, H, W = 2, 4, 16, 16
    x = jax.random.normal(kx, (B, C, H, W), dtype=jnp.float32)
    y = jax.random.randint(ky, (B, H, W), 0, C, dtype=jnp.int32)
    loss = jax.block_until_ready(memory_efficient_soft_dice_loss(x, y))
    ref = jax.block_until_ready(_reference_loss(x, y))
    assert abs(float(loss) - float(ref)) < 1e-4, (float(loss), float(ref))

    # B=1: multi-chunk accumulation, bf16 prediction streaming with in-kernel
    # upcast, uint8 label streaming (no wrapper-side widening HBM pass), and
    # the megacore 2-way spatial split when running on a 2-TC chip.
    B2, C2, H2, W2 = 1, 4, 256, 256
    x2 = jax.random.normal(kx2, (B2, C2, H2, W2),
                           dtype=jnp.float32).astype(jnp.bfloat16)
    y2 = jax.random.randint(ky2, (B2, H2, W2), 0, C2,
                            dtype=jnp.int32).astype(jnp.uint8)
    loss2 = jax.block_until_ready(memory_efficient_soft_dice_loss(x2, y2))
    ref2 = jax.block_until_ready(_reference_loss(x2, y2))
    assert abs(float(loss2) - float(ref2)) < 1e-3, (float(loss2), float(ref2))

    # Awkward 3D spatial shape (not a multiple of 128): exercises the exact
    # zero / out-of-range-label padding path.
    B3, C3, D3, H3, W3 = 2, 3, 7, 9, 11
    x3 = jax.random.normal(kx3, (B3, C3, D3, H3, W3), dtype=jnp.float32)
    y3 = jax.random.randint(ky3, (B3, D3, H3, W3), 0, C3, dtype=jnp.int32)
    loss3 = jax.block_until_ready(memory_efficient_soft_dice_loss(x3, y3))
    ref3 = jax.block_until_ready(_reference_loss(x3, y3))
    assert abs(float(loss3) - float(ref3)) < 1e-4, (float(loss3), float(ref3))

    print("KERNEL_OK")
</pallas_src>

<mosaic_0001>
module attributes {stable_mosaic.version = 11 : i64} {
  func.func @_dice_reduce_kernel(%arg0: i32, %arg1: i32, %arg2: i32, %arg3: memref<1x4x32x128xf32, #tpu.memory_space<vmem>>, %arg4: memref<1x1x32x128xi32, #tpu.memory_space<vmem>>, %arg5: memref<1x1x3x4xf32, #tpu.memory_space<vmem>>, %arg6: memref<3x4x128xf32, #tpu.memory_space<vmem>>) attributes {dimension_semantics = [#tpu.dimension_semantics<parallel>, #tpu.dimension_semantics<parallel>, #tpu.dimension_semantics<arbitrary>], iteration_bounds = array<i64: 2, 1, 1>, scalar_prefetch = 0 : i64, scratch_operands = 1 : i64, tpu.core_type = #tpu.core_type<tc>, window_params = [{transform_indices = @transform_0, window_bounds = array<i64: 1, 4, 32, 128>}, {transform_indices = @transform_1, window_bounds = array<i64: 1, 1, 32, 128>}, {transform_indices = @transform_2, window_bounds = array<i64: 1, 1, 3, 4>}]} {
    %c0_i32 = arith.constant 0 : i32
    %0 = arith.cmpi eq, %arg2, %c0_i32 : i32
    %1 = arith.extui %0 : i1 to i32
    %c0_i32_0 = arith.constant 0 : i32
    %2 = arith.cmpi ne, %1, %c0_i32_0 : i32
    scf.if %2 {
      %cst_31 = arith.constant 0.000000e+00 : f32
      %49 = vector.broadcast %cst_31 : f32 to vector<3x4x128xf32>
      %c0_32 = arith.constant 0 : index
      %c0_33 = arith.constant 0 : index
      %c0_34 = arith.constant 0 : index
      %50 = vector.load %arg6[%c0_32, %c0_33, %c0_34] : memref<3x4x128xf32, #tpu.memory_space<vmem>>, vector<3x4x128xf32>
      tpu.vector_store %arg6[%c0_32, %c0_33, %c0_34], %49 {strides = array<i32>} : memref<3x4x128xf32, #tpu.memory_space<vmem>>, vector<3x4x128xf32>,
    } else {
    }
    %3 = tpu.iota {dimensions = array<i32: 0>} : vector<4x1x128xi32>
    %cst = arith.constant 0.000000e+00 : f32
    %4 = vector.broadcast %cst : f32 to vector<4x128xf32>
    %c0_i32_1 = arith.constant 0 : i32
    %c32_i32 = arith.constant 32 : i32
    %5 = arith.muli %c0_i32_1, %c32_i32 : i32
    %6 = tpu.assume_multiple %5, 32 : i32
    %c0 = arith.constant 0 : index
    %c0_2 = arith.constant 0 : index
    %7 = arith.index_cast %6 : i32 to index
    %c0_3 = arith.constant 0 : index
    %8 = vector.load %arg3[%c0, %c0_2, %7, %c0_3] : memref<1x4x32x128xf32, #tpu.memory_space<vmem>>, vector<1x4x32x128xf32>
    %9 = vector.shape_cast %8 : vector<1x4x32x128xf32> to vector<4x32x128xf32>
    %c0_4 = arith.constant 0 : index
    %c0_5 = arith.constant 0 : index
    %10 = arith.index_cast %6 : i32 to index
    %c0_6 = arith.constant 0 : index
    %11 = vector.load %arg4[%c0_4, %c0_5, %10, %c0_6] : memref<1x1x32x128xi32, #tpu.memory_space<vmem>>, vector<1x1x32x128xi32>
    %12 = vector.shape_cast %11 : vector<1x1x32x128xi32> to vector<32x128xi32>
    %13 = vector.shape_cast %12 : vector<32x128xi32> to vector<1x32x128xi32>
    %14 = vector.broadcast %13 : vector<1x32x128xi32> to vector<4x32x128xi32>
    %15 = vector.broadcast %3 : vector<4x1x128xi32> to vector<4x32x128xi32>
    %16 = arith.cmpi eq, %14, %15 : vector<4x32x128xi32>
    %cst_7 = arith.constant 0.000000e+00 : f32
    %17 = vector.broadcast %cst_7 : f32 to vector<4x32x128xf32>
    %18 = arith.select %16, %9, %17 : vector<4x32x128xi1>, vector<4x32x128xf32>
    %cst_8 = arith.constant dense<0.000000e+00> : vector<4x128xf32>
    %19 = vector.multi_reduction <add>, %18, %cst_8 [1] : vector<4x32x128xf32> to vector<4x128xf32>
    %20 = arith.addf %4, %19 : vector<4x128xf32>
    %cst_9 = arith.constant dense<0.000000e+00> : vector<4x128xf32>
    %21 = vector.multi_reduction <add>, %9, %cst_9 [1] : vector<4x32x128xf32> to vector<4x128xf32>
    %22 = arith.addf %4, %21 : vector<4x128xf32>
    %cst_10 = arith.constant 1.000000e+00 : f32
    %cst_11 = arith.constant 0.000000e+00 : f32
    %23 = vector.broadcast %cst_10 : f32 to vector<4x32x128xf32>
    %24 = vector.broadcast %cst_11 : f32 to vector<4x32x128xf32>
    %25 = arith.select %16, %23, %24 : vector<4x32x128xi1>, vector<4x32x128xf32>
    %cst_12 = arith.constant dense<0.000000e+00> : vector<4x128xf32>
    %26 = vector.multi_reduction <add>, %25, %cst_12 [1] : vector<4x32x128xf32> to vector<4x128xf32>
    %27 = arith.addf %4, %26 : vector<4x128xf32>
    %c1_i32 = arith.constant 1 : i32
    %c0_13 = arith.constant 0 : index
    %c0_14 = arith.constant 0 : index
    %c0_15 = arith.constant 0 : index
    %28 = vector.load %arg6[%c0_13, %c0_14, %c0_15] : memref<3x4x128xf32, #tpu.memory_space<vmem>>, vector<1x4x128xf32>
    %29 = vector.shape_cast %28 : vector<1x4x128xf32> to vector<4x128xf32>
    %30 = arith.addf %29, %20 : vector<4x128xf32>
    %c0_16 = arith.constant 0 : index
    %c0_17 = arith.constant 0 : index
    %c0_18 = arith.constant 0 : index
    %31 = vector.load %arg6[%c0_16, %c0_17, %c0_18] : memref<3x4x128xf32, #tpu.memory_space<vmem>>, vector<1x4x128xf32>
    %32 = vector.shape_cast %31 : vector<1x4x128xf32> to vector<4x128xf32>
    %33 = vector.shape_cast %30 : vector<4x128xf32> to vector<1x4x128xf32>
    tpu.vector_store %arg6[%c0_16, %c0_17, %c0_18], %33 {strides = array<i32>} : memref<3x4x128xf32, #tpu.memory_space<vmem>>, vector<1x4x128xf32>,
    %c1 = arith.constant 1 : index
    %c0_19 = arith.constant 0 : index
    %c0_20 = arith.constant 0 : index
    %34 = vector.load %arg6[%c1, %c0_19, %c0_20] : memref<3x4x128xf32, #tpu.memory_space<vmem>>, vector<1x4x128xf32>
    %35 = vector.shape_cast %34 : vector<1x4x128xf32> to vector<4x128xf32>
    %36 = arith.addf %35, %22 : vector<4x128xf32>
    %c1_21 = arith.constant 1 : index
    %c0_22 = arith.constant 0 : index
    %c0_23 = arith.constant 0 : index
    %37 = vector.load %arg6[%c1_21, %c0_22, %c0_23] : memref<3x4x128xf32, #tpu.memory_space<vmem>>, vector<1x4x128xf32>
    %38 = vector.shape_cast %37 : vector<1x4x128xf32> to vector<4x128xf32>
    %39 = vector.shape_cast %36 : vector<4x128xf32> to vector<1x4x128xf32>
    tpu.vector_store %arg6[%c1_21, %c0_22, %c0_23], %39 {strides = array<i32>} : memref<3x4x128xf32, #tpu.memory_space<vmem>>, vector<1x4x128xf32>,
    %c2 = arith.constant 2 : index
    %c0_24 = arith.constant 0 : index
    %c0_25 = arith.constant 0 : index
    %40 = vector.load %arg6[%c2, %c0_24, %c0_25] : memref<3x4x128xf32, #tpu.memory_space<vmem>>, vector<1x4x128xf32>
    %41 = vector.shape_cast %40 : vector<1x4x128xf32> to vector<4x128xf32>
    %42 = arith.addf %41, %27 : vector<4x128xf32>
    %c2_26 = arith.constant 2 : index
    %c0_27 = arith.constant 0 : index
    %c0_28 = arith.constant 0 : index
    %43 = vector.load %arg6[%c2_26, %c0_27, %c0_28] : memref<3x4x128xf32, #tpu.memory_space<vmem>>, vector<1x4x128xf32>
    %44 = vector.shape_cast %43 : vector<1x4x128xf32> to vector<4x128xf32>
    %45 = vector.shape_cast %42 : vector<4x128xf32> to vector<1x4x128xf32>
    tpu.vector_store %arg6[%c2_26, %c0_27, %c0_28], %45 {strides = array<i32>} : memref<3x4x128xf32, #tpu.memory_space<vmem>>, vector<1x4x128xf32>,
    %c0_i32_29 = arith.constant 0 : i32
    %46 = arith.cmpi eq, %arg2, %c0_i32_29 : i32
    %47 = arith.extui %46 : i1 to i32
    %c0_i32_30 = arith.constant 0 : i32
    %48 = arith.cmpi ne, %47, %c0_i32_30 : i32
    scf.if %48 {
      %c0_31 = arith.constant 0 : index
      %c0_32 = arith.constant 0 : index
      %c0_33 = arith.constant 0 : index
      %49 = vector.load %arg6[%c0_31, %c0_32, %c0_33] : memref<3x4x128xf32, #tpu.memory_space<vmem>>, vector<3x4x128xf32>
      %cst_34 = arith.constant dense<0.000000e+00> : vector<3x4xf32>
      %50 = vector.multi_reduction <add>, %49, %cst_34 [2] : vector<3x4x128xf32> to vector<3x4xf32>
      %c0_35 = arith.constant 0 : index
      %c0_36 = arith.constant 0 : index
      %c0_37 = arith.constant 0 : index
      %c0_38 = arith.constant 0 : index
      %51 = vector.load %arg5[%c0_35, %c0_36, %c0_37, %c0_38] : memref<1x1x3x4xf32, #tpu.memory_space<vmem>>, vector<1x1x3x4xf32>
      %52 = vector.shape_cast %51 : vector<1x1x3x4xf32> to vector<3x4xf32>
      %53 = vector.shape_cast %50 : vector<3x4xf32> to vector<1x1x3x4xf32>
      tpu.vector_store %arg5[%c0_35, %c0_36, %c0_37, %c0_38], %53 {strides = array<i32>} : memref<1x1x3x4xf32, #tpu.memory_space<vmem>>, vector<1x1x3x4xf32>,
    } else {
    }
    return
  }
  func.func @transform_0(%arg0: i32, %arg1: i32, %arg2: i32) -> (i32, i32, i32, i32) {
    %c1_i32 = arith.constant 1 : i32
    %0 = arith.muli %arg1, %c1_i32 : i32
    %1 = arith.addi %0, %arg2 : i32
    %c0_i32 = arith.constant 0 : i32
    %c0_i32_0 = arith.constant 0 : i32
    %c0_i32_1 = arith.constant 0 : i32
    return %arg0, %c0_i32, %1, %c0_i32_0 : i32, i32, i32, i32
  }
  func.func @transform_1(%arg0: i32, %arg1: i32, %arg2: i32) -> (i32, i32, i32, i32) {
    %c1_i32 = arith.constant 1 : i32
    %0 = arith.muli %arg1, %c1_i32 : i32
    %1 = arith.addi %0, %arg2 : i32
    %c0_i32 = arith.constant 0 : i32
    %c0_i32_0 = arith.constant 0 : i32
    %c0_i32_1 = arith.constant 0 : i32
    return %arg0, %c0_i32, %1, %c0_i32_0 : i32, i32, i32, i32
  }
  func.func @transform_2(%arg0: i32, %arg1: i32, %arg2: i32) -> (i32, i32, i32, i32) {
    %c0_i32 = arith.constant 0 : i32
    %c0_i32_0 = arith.constant 0 : i32
    %c0_i32_1 = arith.constant 0 : i32
    return %arg0, %arg1, %c0_i32, %c0_i32_0 : i32, i32, i32, i32
  }
}

</mosaic_0001>

<llo_original>
// kernel: tpu_custom_call.1
$region0: #{tpu_custom_call.1}
  #allocation0 [shape = 'u32[]', space=smem, size = 0x4, offset = 0x4, fixed_abs, tag = 'smem constant byte address 0x4 - core index']
  #allocation1 [shape = 'u32[72,128]{1,0:T(1,128)}', space=vmem, size = 0x9000, scoped, tag = 'internal scratch']
  #allocation2 [shape = 'f32[3,4,128]{2,1,0:T(4,128)}', space=vmem, size = 0x1800, scoped, tag = 'scratch operand']
  %s0 = inlined_call_operand.hbm [shape: f32[2,4,32,128], index: 0, kind: input, shape index: {}]
  %s1 = inlined_call_operand.hbm [shape: s32[2,1,32,128], index: 1, kind: input, shape index: {}]
  %s2 = inlined_call_operand.vmem [shape: f32[2,1,3,4], index: 2, kind: output, shape index: {}]
  %s3 = sld [smem:[#allocation0]]
  $region57: #{tpu_custom_call.1} parent=0
    _
  %s5 = ssub.s32 1, %s3
  %s6 = scalar_select 0, %s5, %s3
  $region1: #{tpu_custom_call.1} parent=0
    #allocation3 [shape = 'u8[131072]{0}', space=vmem, size = 0x20000, scoped, tag = 'input window, operand 0']
    #allocation4 [shape = 's32[2]{0}', space=sflag, size = 0x8, scoped, tag = 'scoped memory for tpu_custom_call.1']
    #allocation5 [shape = 'u8[32768]{0}', space=vmem, size = 0x8000, scoped, tag = 'input window, operand 1']
    #allocation6 [shape = 's32[2]{0}', space=sflag, size = 0x8, scoped, tag = 'scoped memory for tpu_custom_call.1']
    %7 = vsyncpa [#allocation4], 0
    %s8 = scalar_lea.sflag [#allocation4], 1
    %9 = vsyncpa %s8, 0
    %10 = vsyncpa [#allocation6], 0
    %s11 = scalar_lea.sflag [#allocation6], 1
    %12 = vsyncpa %s11, 0
    loop: start=0, step=1, limit=4
    $region2: #{tpu_custom_call.1} parent=1 // loop_pre_header
      _
    $region3: #{tpu_custom_call.1} parent=1 // loop_header
      %s14 = sphi 0, %s18
      %p15 = scmp.ge.s32.totalorder %s14, 4
      %s21 = sphi 0, %s40
      %s22 = sphi 0, %s36
      %s23 = sphi 0, %s32
      %s24 = sphi 0, %s21
      %s25 = sphi 0, %s22
      %s26 = sphi 0, %s23
      %s27 = sphi 0, %s24
      %s28 = sphi 0, %s25
      %s29 = sphi 0, %s26
      %s47 = sphi 0, %s49
      %s50 = sphi 0, %s47
      %s51 = sphi 0, %s50
      %s67 = sphi 0, %s51
      %s77 = sphi 0, %s79
      %s80 = sphi 0, %s77
      %s81 = sphi 0, %s80
      %s97 = sphi 0, %s81
      %s105 = sphi 0, %s107
      %s108 = sphi 0, %s105
      %s109 = sphi 0, %s108
      %s125 = sphi 0, %s109
    $region4: #{tpu_custom_call.1} parent=1 // loop_header_branch
      %17 = sbr.rel (%p15) target = $region8
    $region5: #{tpu_custom_call.1} parent=1 // loop_body
      %s19 = ssub.s32 %s14, 1
      %s20 = ssub.s32 %s14, 2
      %s30 = sadd.s32 1, %s23
      %p31 = scmp.ge.s32.totalorder %s30, 1
      %s32 = scalar_select %p31, 0, %s30
      %s33 = sadd.s32 1, %s22
      %s34 = scalar_select %p31, %s33, %s22
      %p35 = scmp.ge.s32.totalorder %s34, 1
      %s36 = scalar_select %p35, 0, %s34
      %s37 = sadd.s32 1, %s21
      %s38 = scalar_select %p35, %s37, %s21
      %p39 = scmp.ge.s32.totalorder %s38, 2
      %s40 = scalar_select %p39, 0, %s38
      %s41 = sadd.s32 %s22, %s23
      %s42 = sadd.s32 %s36, %s32
      %s43 = ssub.s32 %s21, %s40
      %s44 = ssub.s32 %s41, %s42
      %s45 = sor.u32 %s43, %s44
      %p46 = scmp.eq.s32.totalorder %s45, 0
      %s48 = sadd.s32 %s47, 1
      %s49 = scalar_select %p46, %s47, %s48
      %p52 = pneg %p46
      %p53 = scmp.eq.s32.totalorder %s14, 1
      %p54 = por %p52, %p53
      %p55 = scmp.ne.s32.totalorder %s47, %s50
      %p56 = scmp.eq.s32.totalorder %s14, 0
      %p57 = por %p55, %p56
      %p58 = scmp.ne.s32.totalorder %s47, %s50
      %p59 = scmp.eq.s32.totalorder %s19, 1
      %p60 = por %p58, %p59
      %p61 = scmp.ne.s32.totalorder %s50, %s51
      %p62 = scmp.eq.s32.totalorder %s19, 0
      %p63 = por %p61, %p62
      %p64 = scmp.ne.s32.totalorder %s50, %s51
      %p65 = scmp.eq.s32.totalorder %s20, 1
      %p66 = por %p64, %p65
      %p68 = scmp.ne.s32.totalorder %s51, %s67
      %p69 = scmp.eq.s32.totalorder %s20, 0
      %p70 = por %p68, %p69
      %s71 = sadd.s32 %s22, %s23
      %s72 = sadd.s32 %s36, %s32
      %s73 = ssub.s32 %s21, %s40
      %s74 = ssub.s32 %s71, %s72
      %s75 = sor.u32 %s73, %s74
      %p76 = scmp.eq.s32.totalorder %s75, 0
      %s78 = sadd.s32 %s77, 1
      %s79 = scalar_select %p76, %s77, %s78
      %p82 = pneg %p76
      %p83 = scmp.eq.s32.totalorder %s14, 1
      %p84 = por %p82, %p83
      %p85 = scmp.ne.s32.totalorder %s77, %s80
      %p86 = scmp.eq.s32.totalorder %s14, 0
      %p87 = por %p85, %p86
      %p88 = scmp.ne.s32.totalorder %s77, %s80
      %p89 = scmp.eq.s32.totalorder %s19, 1
      %p90 = por %p88, %p89
      %p91 = scmp.ne.s32.totalorder %s80, %s81
      %p92 = scmp.eq.s32.totalorder %s19, 0
      %p93 = por %p91, %p92
      %p94 = scmp.ne.s32.totalorder %s80, %s81
      %p95 = scmp.eq.s32.totalorder %s20, 1
      %p96 = por %p94, %p95
      %p98 = scmp.ne.s32.totalorder %s81, %s97
      %p99 = scmp.eq.s32.totalorder %s20, 0
      %p100 = por %p98, %p99
      %s101 = ssub.s32 %s21, %s40
      %s102 = ssub.s32 %s22, %s36
      %s103 = sor.u32 %s101, %s102
      %p104 = scmp.eq.s32.totalorder %s103, 0
      %s106 = sadd.s32 %s105, 1
      %s107 = scalar_select %p104, %s105, %s106
      %p110 = pneg %p104
      %p111 = scmp.eq.s32.totalorder %s14, 1
      %p112 = por %p110, %p111
      %p113 = scmp.ne.s32.totalorder %s105, %s108
      %p114 = scmp.eq.s32.totalorder %s14, 0
      %p115 = por %p113, %p114
      %p116 = scmp.ne.s32.totalorder %s105, %s108
      %p117 = scmp.eq.s32.totalorder %s19, 1
      %p118 = por %p116, %p117
      %p119 = scmp.ne.s32.totalorder %s108, %s109
      %p120 = scmp.eq.s32.totalorder %s19, 0
      %p121 = por %p119, %p120
      %p122 = scmp.ne.s32.totalorder %s108, %s109
      %p123 = scmp.eq.s32.totalorder %s20, 1
      %p124 = por %p122, %p123
      %p126 = scmp.ne.s32.totalorder %s109, %s125
      %p127 = scmp.eq.s32.totalorder %s20, 0
      %p128 = por %p126, %p127
      %p129 = scmp.le.s32.totalorder 1, %s14
      %p130 = scmp.lt.s32.totalorder %s14, 3
      %p131 = pnand %p129, %p130
      %p132 = pneg %p131
      // Predicated region
      $region9: #{tpu_custom_call.1} parent=5 // pred_check
        _
      $region10: #{tpu_custom_call.1} parent=5 // pred_check_branch
        %134 = sbr.rel (%p131) target = $region12
      $region11: #{tpu_custom_call.1} parent=5 // pred_region
        %s135 = ssub.s32 %s14, 1
      $region12: #{tpu_custom_call.1} parent=5 // pred_fallthru
        _
      %p136 = scmp.lt.s32.totalorder %s14, 2
      // Predicated region
      $region13: #{tpu_custom_call.1} parent=5 // pred_check
        %p137 = pneg %p136
      $region14: #{tpu_custom_call.1} parent=5 // pred_check_branch
        %139 = sbr.rel (%p137) target = $region16
      $region15: #{tpu_custom_call.1} parent=5 // pred_region
        // Predicated region
        $region17: #{tpu_custom_call.1} parent=15 // pred_check
          %p140 = pneg %p57
        $region18: #{tpu_custom_call.1} parent=15 // pred_check_branch
          %142 = sbr.rel (%p140) target = $region20
        $region19: #{tpu_custom_call.1} parent=15 // pred_region
          %s143 = sand.u32 %s47, 1
          %s144 = scalar_lea.sflag [#allocation4], %s143
          %s145 = sand.u32 %s47, 1
          %s146 = smul.addr %s145, 128
          %s147 = scalar_lea.vmem [#allocation3], %s146
          %s148 = sadd.s32 %s22, %s23
          %s149 = smul.u32 4, %s148
          %151 = vsyncadd %s144, 0
          %s152 = smul.addr %s21, 16
          %s153 = sadd.s32 %s149, %s152
          %s154 = smul.addr %s153, 8
          %s155 = scalar_lea.hbm %s0, %s154
          %s156 = sshll.u32 %s155, 4
          %s157 = int_to_ptr.hbm [resolvable:$true] %s156
          %s158 = sshll.u32 %s147, 4
          %s159 = int_to_ptr.vmem [resolvable:$true] %s158
          %164 = dma.hbm_to_vmem [thread:$0]  %s157, 2048, %s159, %s144, 128, 128, 8
        $region20: #{tpu_custom_call.1} parent=15 // pred_fallthru
          _
        // Predicated region
        $region21: #{tpu_custom_call.1} parent=15 // pred_check
          %p165 = pneg %p87
        $region22: #{tpu_custom_call.1} parent=15 // pred_check_branch
          %167 = sbr.rel (%p165) target = $region24
        $region23: #{tpu_custom_call.1} parent=15 // pred_region
          %s168 = sand.u32 %s77, 1
          %s169 = scalar_lea.sflag [#allocation6], %s168
          %s170 = sand.u32 %s77, 1
          %s171 = smul.addr %s170, 32
          %s172 = scalar_lea.vmem [#allocation5], %s171
          %s173 = sadd.s32 %s22, %s23
          %s174 = smul.u32 4, %s173
          %176 = vsyncadd %s169, 0
          %s177 = smul.addr %s21, 4
          %s178 = sadd.s32 %s174, %s177
          %s179 = smul.addr %s178, 8
          %s180 = scalar_lea.hbm %s1, %s179
          %s181 = sshll.u32 %s180, 4
          %s182 = int_to_ptr.hbm [resolvable:$true] %s181
          %s183 = sshll.u32 %s172, 4
          %s184 = int_to_ptr.vmem [resolvable:$true] %s183
          %189 = dma.hbm_to_vmem [thread:$0]  %s182, 512, %s184, %s169, 128, 128, 8
        $region24: #{tpu_custom_call.1} parent=15 // pred_fallthru
          _
      $region16: #{tpu_custom_call.1} parent=5 // pred_fallthru
        _
      %p190 = scmp.le.s32.totalorder 1, %s14
      %p191 = scmp.lt.s32.totalorder %s14, 3
      %p192 = pnand %p190, %p191
      %p193 = pneg %p192
      // Predicated region
      $region25: #{tpu_custom_call.1} parent=5 // pred_check
        _
      $region26: #{tpu_custom_call.1} parent=5 // pred_check_branch
        %195 = sbr.rel (%p192) target = $region28
      $region27: #{tpu_custom_call.1} parent=5 // pred_region
        %s196 = ssub.s32 %s14, 1
        %s197 = sand.u32 %s50, 1
        %s198 = scalar_lea.sflag [#allocation4], %s197
        %s199 = sand.u32 %s50, 1
        %s200 = smul.addr %s199, 128
        %s201 = scalar_lea.vmem [#allocation3], %s200
        // Predicated region
        $region29: #{tpu_custom_call.1} parent=27 // pred_check
          %p202 = pneg %p63
        $region30: #{tpu_custom_call.1} parent=27 // pred_check_branch
          %204 = sbr.rel (%p202) target = $region32
        $region31: #{tpu_custom_call.1} parent=27 // pred_region
          %206 = dma.done %s198, 2048
        $region32: #{tpu_custom_call.1} parent=27 // pred_fallthru
          _
        %s207 = sand.u32 %s80, 1
        %s208 = scalar_lea.sflag [#allocation6], %s207
        %s209 = sand.u32 %s80, 1
        %s210 = smul.addr %s209, 32
        %s211 = scalar_lea.vmem [#allocation5], %s210
        // Predicated region
        $region33: #{tpu_custom_call.1} parent=27 // pred_check
          %p212 = pneg %p93
        $region34: #{tpu_custom_call.1} parent=27 // pred_check_branch
          %214 = sbr.rel (%p212) target = $region36
        $region35: #{tpu_custom_call.1} parent=27 // pred_region
          %216 = dma.done %s208, 512
        $region36: #{tpu_custom_call.1} parent=27 // pred_fallthru
          _
        %s217 = sand.u32 %s50, 1
        %s218 = scalar_lea.sflag [#allocation4], %s217
        %s219 = sand.u32 %s50, 1
        %s220 = smul.addr %s219, 128
        %s221 = scalar_lea.vmem [#allocation3], %s220
        %p222 = pneg %p63
        %p223 = pneg %p60
        %s224 = sand.u32 %s80, 1
        %s225 = scalar_lea.sflag [#allocation6], %s224
        %s226 = sand.u32 %s80, 1
        %s227 = smul.addr %s226, 32
        %s228 = scalar_lea.vmem [#allocation5], %s227
        %p229 = pneg %p93
        %p230 = pneg %p90
        %p231 = pneg %p121
        %p232 = pneg %p118
        %p233 = scmp.lt.s32.totalorder %s24, 1
        %s234 = scalar_select %p233, %s24, 1
        %p235 = scmp.lt.s32.totalorder %s25, 0
        %s236 = scalar_select %p235, %s25, 0
        %s237 = sadd.s32 %s236, %s234
        %s238 = smul.addr %s237, 4
        %s239 = scalar_lea.vmem %s2, %s238
        %s240 = sadd.s32 %s25, %s26
        %s241 = smul.u32 4, %s240
        %s242 = sadd.s32 %s25, %s26
        %s243 = smul.u32 4, %s242
        %p244 = scmp.lt.s32.totalorder %s24, 1
        %s245 = scalar_select %p244, %s24, 1
        %p246 = scmp.lt.s32.totalorder %s25, 0
        %s247 = scalar_select %p246, %s25, 0
        %s248 = sadd.s32 %s247, %s245
        %s249 = smul.addr %s248, 4
        %s250 = scalar_lea.vmem %s2, %s249
        %p251 = scmp.eq.s32.totalorder %s26, 0
        // Predicated region
        $region37: #{tpu_custom_call.1} parent=27 // pred_check
          %p252 = pneg %p251
        $region38: #{tpu_custom_call.1} parent=27 // pred_check_branch
          %254 = sbr.rel (%p252) target = $region40
        $region39: #{tpu_custom_call.1} parent=27 // pred_region
          %255 = vst [vmem:[#allocation2] sm:$0xf] 0.0
          %256 = vst [vmem:[#allocation2 + $0x4] sm:$0xf] 0.0
          %257 = vst [vmem:[#allocation2 + $0x8] sm:$0xf] 0.0
        $region40: #{tpu_custom_call.1} parent=27 // pred_fallthru
          _
        %v258 = vld [vmem:[%s201] sm:$0xff]
        %v259 = vld [vmem:[%s201 + $0x8] sm:$0xff]
        %v260 = vld [vmem:[%s201 + $0x10] sm:$0xff]
        %v261 = vld [vmem:[%s201 + $0x18] sm:$0xff]
        %v262 = vld [vmem:[%s201 + $0x20] sm:$0xff]
        %v263 = vld [vmem:[%s201 + $0x28] sm:$0xff]
        %v264 = vld [vmem:[%s201 + $0x30] sm:$0xff]
        %v265 = vld [vmem:[%s201 + $0x38] sm:$0xff]
        %v266 = vld [vmem:[%s201 + $0x40] sm:$0xff]
        %v267 = vld [vmem:[%s201 + $0x48] sm:$0xff]
        %v268 = vld [vmem:[%s201 + $0x50] sm:$0xff]
        %v269 = vld [vmem:[%s201 + $0x58] sm:$0xff]
        %v270 = vld [vmem:[%s201 + $0x60] sm:$0xff]
        %v271 = vld [vmem:[%s201 + $0x68] sm:$0xff]
        %v272 = vld [vmem:[%s201 + $0x70] sm:$0xff]
        %v273 = vld [vmem:[%s201 + $0x78] sm:$0xff]
        %v274 = vld [vmem:[%s211] sm:$0xff]
        %v275 = vld [vmem:[%s211 + $0x8] sm:$0xff]
        %v276 = vld [vmem:[%s211 + $0x10] sm:$0xff]
        %v277 = vld [vmem:[%s211 + $0x18] sm:$0xff]
        %vm278 = vcmp.eq.s32.totalorder %v274, 0
        %vm279 = vcmp.eq.s32.totalorder %v275, 0
        %vm280 = vcmp.eq.s32.totalorder %v276, 0
        %vm281 = vcmp.eq.s32.totalorder %v277, 0
        %vm282 = vcmp.eq.s32.totalorder %v274, 1
        %vm283 = vcmp.eq.s32.totalorder %v275, 1
        %vm284 = vcmp.eq.s32.totalorder %v276, 1
        %vm285 = vcmp.eq.s32.totalorder %v277, 1
        %vm286 = vcmp.eq.s32.totalorder %v274, 2
        %vm287 = vcmp.eq.s32.totalorder %v275, 2
        %vm288 = vcmp.eq.s32.totalorder %v276, 2
        %vm289 = vcmp.eq.s32.totalorder %v277, 2
        %vm290 = vcmp.eq.s32.totalorder %v274, 3
        %vm291 = vcmp.eq.s32.totalorder %v275, 3
        %vm292 = vcmp.eq.s32.totalorder %v276, 3
        %vm293 = vcmp.eq.s32.totalorder %v277, 3
        %v294 = vsel %vm278, %v258, 0.0
        %v295 = vsel %vm279, %v259, 0.0
        %v296 = vsel %vm280, %v260, 0.0
        %v297 = vsel %vm281, %v261, 0.0
        %v298 = vsel %vm282, %v262, 0.0
        %v299 = vsel %vm283, %v263, 0.0
        %v300 = vsel %vm284, %v264, 0.0
        %v301 = vsel %vm285, %v265, 0.0
        %v302 = vsel %vm286, %v266, 0.0
        %v303 = vsel %vm287, %v267, 0.0
        %v304 = vsel %vm288, %v268, 0.0
        %v305 = vsel %vm289, %v269, 0.0
        %v306 = vsel %vm290, %v270, 0.0
        %v307 = vsel %vm291, %v271, 0.0
        %v308 = vsel %vm292, %v272, 0.0
        %v309 = vsel %vm293, %v273, 0.0
        %v310 = vadd.f32 %v294, %v295
        %v311 = vadd.f32 %v310, %v296
        %v312 = vadd.f32 %v311, %v297
        %v313 = vrot.slane %v312, 4
        %v314 = vadd.f32 %v312, %v313
        %v315 = vrot.slane %v314, 2
        %v316 = vadd.f32 %v314, %v315
        %v317 = vrot.slane %v316, 1
        %v318 = vadd.f32 %v316, %v317
        %v319 = vadd.f32 %v298, %v299
        %v320 = vadd.f32 %v319, %v300
        %v321 = vadd.f32 %v320, %v301
        %v322 = vrot.slane %v321, 4
        %v323 = vadd.f32 %v321, %v322
        %v324 = vrot.slane %v323, 2
        %v325 = vadd.f32 %v323, %v324
        %v326 = vrot.slane %v325, 1
        %v327 = vadd.f32 %v325, %v326
        %v328 = vadd.f32 %v302, %v303
        %v329 = vadd.f32 %v328, %v304
        %v330 = vadd.f32 %v329, %v305
        %v331 = vrot.slane %v330, 4
        %v332 = vadd.f32 %v330, %v331
        %v333 = vrot.slane %v332, 2
        %v334 = vadd.f32 %v332, %v333
        %v335 = vrot.slane %v334, 1
        %v336 = vadd.f32 %v334, %v335
        %v337 = vadd.f32 %v306, %v307
        %v338 = vadd.f32 %v337, %v308
        %v339 = vadd.f32 %v338, %v309
        %v340 = vrot.slane %v339, 4
        %v341 = vadd.f32 %v339, %v340
        %v342 = vrot.slane %v341, 2
        %v343 = vadd.f32 %v341, %v342
        %v344 = vrot.slane %v343, 1
        %v345 = vadd.f32 %v343, %v344
        %v346 = vadd.f32 %v318, 0.0
        %v347 = vadd.f32 %v327, 0.0
        %v348 = vadd.f32 %v336, 0.0
        %v349 = vadd.f32 %v345, 0.0
        %v350 = vadd.f32 %v258, %v259
        %v351 = vadd.f32 %v350, %v260
        %v352 = vadd.f32 %v351, %v261
        %v353 = vrot.slane %v352, 4
        %v354 = vadd.f32 %v352, %v353
        %v355 = vrot.slane %v354, 2
        %v356 = vadd.f32 %v354, %v355
        %v357 = vrot.slane %v356, 1
        %v358 = vadd.f32 %v356, %v357
        %v359 = vadd.f32 %v262, %v263
        %v360 = vadd.f32 %v359, %v264
        %v361 = vadd.f32 %v360, %v265
        %v362 = vrot.slane %v361, 4
        %v363 = vadd.f32 %v361, %v362
        %v364 = vrot.slane %v363, 2
        %v365 = vadd.f32 %v363, %v364
        %v366 = vrot.slane %v365, 1
        %v367 = vadd.f32 %v365, %v366
        %v368 = vadd.f32 %v266, %v267
        %v369 = vadd.f32 %v368, %v268
        %v370 = vadd.f32 %v369, %v269
        %v371 = vrot.slane %v370, 4
        %v372 = vadd.f32 %v370, %v371
        %v373 = vrot.slane %v372, 2
        %v374 = vadd.f32 %v372, %v373
        %v375 = vrot.slane %v374, 1
        %v376 = vadd.f32 %v374, %v375
        %v377 = vadd.f32 %v270, %v271
        %v378 = vadd.f32 %v377, %v272
        %v379 = vadd.f32 %v378, %v273
        %v380 = vrot.slane %v379, 4
        %v381 = vadd.f32 %v379, %v380
        %v382 = vrot.slane %v381, 2
        %v383 = vadd.f32 %v381, %v382
        %v384 = vrot.slane %v383, 1
        %v385 = vadd.f32 %v383, %v384
        %v386 = vadd.f32 %v358, 0.0
        %v387 = vadd.f32 %v367, 0.0
        %v388 = vadd.f32 %v376, 0.0
        %v389 = vadd.f32 %v385, 0.0
        %v390 = vsel %vm278, 1.0, 0.0
        %v391 = vsel %vm279, 1.0, 0.0
        %v392 = vsel %vm280, 1.0, 0.0
        %v393 = vsel %vm281, 1.0, 0.0
        %v394 = vsel %vm282, 1.0, 0.0
        %v395 = vsel %vm283, 1.0, 0.0
        %v396 = vsel %vm284, 1.0, 0.0
        %v397 = vsel %vm285, 1.0, 0.0
        %v398 = vsel %vm286, 1.0, 0.0
        %v399 = vsel %vm287, 1.0, 0.0
        %v400 = vsel %vm288, 1.0, 0.0
        %v401 = vsel %vm289, 1.0, 0.0
        %v402 = vsel %vm290, 1.0, 0.0
        %v403 = vsel %vm291, 1.0, 0.0
        %v404 = vsel %vm292, 1.0, 0.0
        %v405 = vsel %vm293, 1.0, 0.0
        %v406 = vadd.f32 %v390, %v391
        %v407 = vadd.f32 %v406, %v392
        %v408 = vadd.f32 %v407, %v393
        %v409 = vrot.slane %v408, 4
        %v410 = vadd.f32 %v408, %v409
        %v411 = vrot.slane %v410, 2
        %v412 = vadd.f32 %v410, %v411
        %v413 = vrot.slane %v412, 1
        %v414 = vadd.f32 %v412, %v413
        %v415 = vadd.f32 %v394, %v395
        %v416 = vadd.f32 %v415, %v396
        %v417 = vadd.f32 %v416, %v397
        %v418 = vrot.slane %v417, 4
        %v419 = vadd.f32 %v417, %v418
        %v420 = vrot.slane %v419, 2
        %v421 = vadd.f32 %v419, %v420
        %v422 = vrot.slane %v421, 1
        %v423 = vadd.f32 %v421, %v422
        %v424 = vadd.f32 %v398, %v399
        %v425 = vadd.f32 %v424, %v400
        %v426 = vadd.f32 %v425, %v401
        %v427 = vrot.slane %v426, 4
        %v428 = vadd.f32 %v426, %v427
        %v429 = vrot.slane %v428, 2
        %v430 = vadd.f32 %v428, %v429
        %v431 = vrot.slane %v430, 1
        %v432 = vadd.f32 %v430, %v431
        %v433 = vadd.f32 %v402, %v403
        %v434 = vadd.f32 %v433, %v404
        %v435 = vadd.f32 %v434, %v405
        %v436 = vrot.slane %v435, 4
        %v437 = vadd.f32 %v435, %v436
        %v438 = vrot.slane %v437, 2
        %v439 = vadd.f32 %v437, %v438
        %v440 = vrot.slane %v439, 1
        %v441 = vadd.f32 %v439, %v440
        %v442 = vadd.f32 %v414, 0.0
        %v443 = vadd.f32 %v423, 0.0
        %v444 = vadd.f32 %v432, 0.0
        %v445 = vadd.f32 %v441, 0.0
        %v446 = vld [vmem:[#allocation2] sm:$0xf]
        %vm451 = vcmask 1041409
        %v452 = vsel %vm451, %v347, %v346
        %vm453 = vcmask 1042434
        %v454 = vsel %vm453, %v348, %v452
        %vm455 = vcmask 1043459
        %v456 = vsel %vm455, %v349, %v454
        %v458 = vadd.f32 %v446, %v456
        %459 = vst [vmem:[#allocation2] sm:$0xf] %v458
        %s460 = scalar_lea.vmem [#allocation2], 4
        %v461 = vld [vmem:[%s460] sm:$0xf]
        %v466 = vsel %vm451, %v387, %v386
        %v467 = vsel %vm453, %v388, %v466
        %v468 = vsel %vm455, %v389, %v467
        %v470 = vadd.f32 %v461, %v468
        %471 = vst [vmem:[%s460] sm:$0xf] %v470
        %s472 = scalar_lea.vmem [#allocation2], 8
        %v473 = vld [vmem:[%s472] sm:$0xf]
        %v478 = vsel %vm451, %v443, %v442
        %v479 = vsel %vm453, %v444, %v478
        %v480 = vsel %vm455, %v445, %v479
        %v482 = vadd.f32 %v473, %v480
        %483 = vst [vmem:[%s472] sm:$0xf] %v482
        // Predicated region
        $region41: #{tpu_custom_call.1} parent=27 // pred_check
          %p484 = pneg %p251
        $region42: #{tpu_custom_call.1} parent=27 // pred_check_branch
          %486 = sbr.rel (%p484) target = $region44
        $region43: #{tpu_custom_call.1} parent=27 // pred_region
          %v487 = vld [vmem:[#allocation2] sm:$0xf]
          %v488 = vld [vmem:[#allocation2 + $0x4] sm:$0xf]
          %v489 = vld [vmem:[#allocation2 + $0x8] sm:$0xf]
          %vm490 = vcmask 1043456
          %v491 = vsel %vm490, %v487, 0.0
          %492 = vadd.xlane.f32.xlu0 %v491
          %v493 = vpop.xlane.xlu0 %492
          %v494 = vsel %vm490, %v488, 0.0
          %495 = vadd.xlane.f32.xlu0 %v494
          %v496 = vpop.xlane.xlu0 %495
          %v497 = vsel %vm490, %v489, 0.0
          %498 = vadd.xlane.f32.xlu0 %v497
          %v499 = vpop.xlane.xlu0 %498
          %v503 = vlaneseq
          %v504 = vand.u32 %v503, 127
          %v505 = vperm.slane %v493, %v504
          %v506 = vperm.slane %v496, %v504
          %v507 = vperm.slane %v499, %v504
          %v508 = vsel %vm451, %v506, %v505
          %v509 = vsel %vm453, %v507, %v508
          %vm511 = vcmask 26624
          %512 = vst.msk [vmem:[%s250] sm:$0x7] %vm511, %v509
        $region44: #{tpu_custom_call.1} parent=27 // pred_fallthru
          _
        %p513 = scmp.lt.s32.totalorder %s24, 1
        %s514 = scalar_select %p513, %s24, 1
        %p515 = scmp.lt.s32.totalorder %s25, 0
        %s516 = scalar_select %p515, %s25, 0
        %s517 = sadd.s32 %s516, %s514
        %s518 = smul.addr %s517, 4
        %s519 = scalar_lea.vmem %s2, %s518
        // Predicated region
        $region45: #{tpu_custom_call.1} parent=27 // pred_check
          %p520 = pneg %p118
        $region46: #{tpu_custom_call.1} parent=27 // pred_check_branch
          %522 = sbr.rel (%p520) target = $region48
        $region47: #{tpu_custom_call.1} parent=27 // pred_region
          _
        $region48: #{tpu_custom_call.1} parent=27 // pred_fallthru
          _
      $region28: #{tpu_custom_call.1} parent=5 // pred_fallthru
        _
      %p523 = scmp.le.s32.totalorder 2, %s14
      // Predicated region
      $region49: #{tpu_custom_call.1} parent=5 // pred_check
        %p524 = pneg %p523
      $region50: #{tpu_custom_call.1} parent=5 // pred_check_branch
        %526 = sbr.rel (%p524) target = $region52
      $region51: #{tpu_custom_call.1} parent=5 // pred_region
        %s527 = ssub.s32 %s14, 2
        // Predicated region
        $region53: #{tpu_custom_call.1} parent=51 // pred_check
          %p528 = pneg %p124
        $region54: #{tpu_custom_call.1} parent=51 // pred_check_branch
          %530 = sbr.rel (%p528) target = $region56
        $region55: #{tpu_custom_call.1} parent=51 // pred_region
          %p531 = scmp.lt.s32.totalorder %s27, 1
          %s532 = scalar_select %p531, %s27, 1
          %p533 = scmp.lt.s32.totalorder %s28, 0
          %s534 = scalar_select %p533, %s28, 0
          %s535 = sadd.s32 %s534, %s532
          %s536 = smul.addr %s535, 4
          %s537 = scalar_lea.vmem %s2, %s536
        $region56: #{tpu_custom_call.1} parent=51 // pred_fallthru
          _
      $region52: #{tpu_custom_call.1} parent=5 // pred_fallthru
        _
    $region6: #{tpu_custom_call.1} parent=1 // loop_footer
      %s18 = sadd.s32 1, %s14
    $region7: #{tpu_custom_call.1} parent=1 // loop_footer_branch
      %13 = sbr.rel target = $region3
    $region8: #{tpu_custom_call.1} parent=1 // loop_exit
      _
    %538 = vsyncpa [#allocation4], 1
    %s539 = scalar_lea.sflag [#allocation4], 1
    %540 = vsyncpa %s539, 1
    %541 = vsyncpa [#allocation6], 1
    %s542 = scalar_lea.sflag [#allocation6], 1
    %543 = vsyncpa %s542, 1

</llo_original>
